<compile_context>
chip_gen: v7x
topology: tpu7x:2x2x1
jax: 0.10.0
libtpu: 0.0.40
codegen_flags: <defaults>
</compile_context>

<pallas_src>
import math

import jax
import jax.numpy as jnp
from jax.experimental import pallas as pl
from jax.experimental.pallas import tpu as pltpu

Z_DIM = 2
NUM_CLASSES = 2
H = 64
OUT_PAD = 128   # lane-dense padded logits width (multiple of 128)


def _aux_kernel(z_ref, w1_ref, w2_ref, w3_ref, b_ref, logits_ref):
    # z:  (B, Z_DIM)        f32
    # w1: (Z_DIM, H)        f32   (consumed by VPU FMAs)
    # w2: (H, H)            bf16
    # w3: (H, OUT_PAD)      bf16  (zero-padded beyond NUM_CLASSES)
    # b:  (3, OUT_PAD)      f32   rows = [b1 | b2 | b3], zero-padded to 128 lanes
    z = z_ref[...]

    # ---- layer 1: Linear(2 -> 64) as VPU rank-1 FMAs (K=2 is too small for
    # the MXU; keep it off the MXU issue chain entirely) ----
    h = (z[:, 0:1] * w1_ref[0:1, :]
         + z[:, 1:2] * w1_ref[1:2, :]
         + b_ref[0:1, 0:H])
    h = jnp.maximum(h, 0.0)

    # ---- layer 2: Linear(64 -> 64) on the MXU, bf16 operands / f32 accum ----
    h = (jnp.dot(h.astype(jnp.bfloat16), w2_ref[...],
                 preferred_element_type=jnp.float32)
         + b_ref[1:2, 0:H])
    h = jnp.maximum(h, 0.0)

    # ---- layer 3: Linear(64 -> num_classes), lane-dense padded store ----
    logits_ref[...] = (jnp.dot(h.astype(jnp.bfloat16), w3_ref[...],
                               preferred_element_type=jnp.float32)
                       + b_ref[2:3, :])


def init_params(key, z_dim=Z_DIM, num_classes=NUM_CLASSES):
    """Synthetic init mimicking nn.Linear's U(-1/sqrt(fan_in), 1/sqrt(fan_in))."""
    def linear(k, fan_in, fan_out):
        k1, k2 = jax.random.split(k)
        bound = 1.0 / math.sqrt(fan_in)
        W = jax.random.uniform(k1, (fan_in, fan_out), jnp.float32, -bound, bound)
        b = jax.random.uniform(k2, (fan_out,), jnp.float32, -bound, bound)
        return W, b

    k1, k2, k3 = jax.random.split(key, 3)
    W1, b1 = linear(k1, z_dim, H)
    W2, b2 = linear(k2, H, H)
    W3, b3 = linear(k3, H, num_classes)
    return dict(W1=W1, b1=b1, W2=W2, b2=b2, W3=W3, b3=b3)


def _pack_params(params):
    """Host-side packing: bf16 MXU weights, zero-padded W3, packed biases."""
    w1 = params['W1'].astype(jnp.float32)                        # (2, 64)   f32
    w2 = params['W2'].astype(jnp.bfloat16)                       # (64, 64)  bf16
    w3 = jnp.zeros((H, OUT_PAD), jnp.float32)
    w3 = w3.at[:, :NUM_CLASSES].set(params['W3']).astype(jnp.bfloat16)  # (64,128)
    b = jnp.zeros((3, OUT_PAD), jnp.float32)
    b = b.at[0, :H].set(params['b1'])
    b = b.at[1, :H].set(params['b2'])
    b = b.at[2, :NUM_CLASSES].set(params['b3'])
    return w1, w2, w3, b


def aux_forward(params, z):
    """q(y|z): returns classifier logits plus normalized Categorical params."""
    B = z.shape[0]
    w1, w2, w3, b = _pack_params(params)

    flops = 2 * B * (Z_DIM * H + H * H + H * OUT_PAD)
    bytes_accessed = (B * Z_DIM * 4          # z
                      + Z_DIM * H * 4        # w1 f32
                      + H * H * 2            # w2 bf16
                      + H * OUT_PAD * 2      # w3 bf16
                      + 3 * OUT_PAD * 4      # packed biases
                      + B * OUT_PAD * 4)     # padded logits out

    vspec = pl.BlockSpec(memory_space=pltpu.MemorySpace.VMEM)
    logits_pad = pl.pallas_call(
        _aux_kernel,
        out_shape=jax.ShapeDtypeStruct((B, OUT_PAD), jnp.float32),
        in_specs=[vspec] * 5,
        out_specs=vspec,
        compiler_params=pltpu.CompilerParams(vmem_limit_bytes=16 << 20),
        cost_estimate=pl.CostEstimate(flops=flops, transcendentals=0,
                                      bytes_accessed=bytes_accessed),
    )(z.astype(jnp.float32), w1, w2, w3, b)

    logits = logits_pad[:, :NUM_CLASSES]
    # Glue: Categorical(logits=...) normalization (torch normalizes internally).
    log_probs = logits - jax.scipy.special.logsumexp(logits, axis=-1, keepdims=True)
    return {'logits': logits, 'log_probs': log_probs, 'probs': jnp.exp(log_probs)}


def _reference_forward_matched(params, z):
    """Pure-JAX reference with the same bf16-at-the-dot numerics as the kernel."""
    w1, w2, w3, b = _pack_params(params)
    h = jnp.maximum(z @ w1 + b[0, :H], 0.0)
    h = jnp.maximum(jnp.dot(h.astype(jnp.bfloat16), w2,
                            preferred_element_type=jnp.float32) + b[1, :H], 0.0)
    logits = (jnp.dot(h.astype(jnp.bfloat16), w3,
                      preferred_element_type=jnp.float32) + b[2, :])
    return logits[:, :NUM_CLASSES]


def _reference_forward_f32(params, z):
    """Full-precision reference of the original module."""
    h = jnp.maximum(z @ params['W1'] + params['b1'], 0.0)
    h = jnp.maximum(h @ params['W2'] + params['b2'], 0.0)
    return h @ params['W3'] + params['b3']


if __name__ == "__main__":
    key = jax.random.PRNGKey(0)
    k_param, k_z = jax.random.split(key)

    B = 8
    params = init_params(k_param)
    z = jax.random.normal(k_z, (B, Z_DIM), jnp.float32)

    out = aux_forward(params, z)
    jax.block_until_ready(out)

    # tight check vs a reference using identical bf16-at-the-dot numerics
    ref = _reference_forward_matched(params, z)
    assert jnp.allclose(out['logits'], ref, atol=2e-3, rtol=2e-3)
    # loose sanity check vs the pure-f32 reference (bf16 weights => ~1e-2 error)
    ref32 = _reference_forward_f32(params, z)
    assert jnp.allclose(out['logits'], ref32, atol=5e-2, rtol=5e-2)
    # normalized Categorical params are finite and consistent
    assert bool(jnp.all(jnp.isfinite(out['log_probs'])))
    assert jnp.allclose(out['probs'].sum(-1), 1.0, atol=1e-5)

    print("KERNEL_OK")
</pallas_src>

<mosaic_0001>
module attributes {stable_mosaic.version = 11 : i64} {
  func.func @_aux_kernel(%arg0: memref<8x2xf32, #tpu.memory_space<vmem>>, %arg1: memref<2x64xf32, #tpu.memory_space<vmem>>, %arg2: memref<64x64xbf16, #tpu.memory_space<vmem>>, %arg3: memref<64x128xbf16, #tpu.memory_space<vmem>>, %arg4: memref<3x128xf32, #tpu.memory_space<vmem>>, %arg5: memref<8x128xf32, #tpu.memory_space<vmem>>) attributes {dimension_semantics = [], scalar_prefetch = 0 : i64, scratch_operands = 0 : i64, tpu.core_type = #tpu.core_type<tc>} {
    %c0 = arith.constant 0 : index
    %c0_0 = arith.constant 0 : index
    %0 = vector.load %arg0[%c0, %c0_0] : memref<8x2xf32, #tpu.memory_space<vmem>>, vector<8x2xf32>
    %1 = vector.extract_strided_slice %0 {offsets = [0, 0], sizes = [8, 1], strides = [1, 1]} : vector<8x2xf32> to vector<8x1xf32>
    %c0_1 = arith.constant 0 : index
    %c0_2 = arith.constant 0 : index
    %2 = vector.load %arg1[%c0_1, %c0_2] : memref<2x64xf32, #tpu.memory_space<vmem>>, vector<1x64xf32>
    %3 = vector.broadcast %1 : vector<8x1xf32> to vector<8x64xf32>
    %4 = vector.broadcast %2 : vector<1x64xf32> to vector<8x64xf32>
    %5 = arith.mulf %3, %4 : vector<8x64xf32>
    %6 = vector.extract_strided_slice %0 {offsets = [0, 1], sizes = [8, 1], strides = [1, 1]} : vector<8x2xf32> to vector<8x1xf32>
    %c1 = arith.constant 1 : index
    %c0_3 = arith.constant 0 : index
    %7 = vector.load %arg1[%c1, %c0_3] : memref<2x64xf32, #tpu.memory_space<vmem>>, vector<1x64xf32>
    %8 = vector.broadcast %6 : vector<8x1xf32> to vector<8x64xf32>
    %9 = vector.broadcast %7 : vector<1x64xf32> to vector<8x64xf32>
    %10 = arith.mulf %8, %9 : vector<8x64xf32>
    %11 = arith.addf %5, %10 : vector<8x64xf32>
    %c0_4 = arith.constant 0 : index
    %c0_5 = arith.constant 0 : index
    %12 = vector.load %arg4[%c0_4, %c0_5] : memref<3x128xf32, #tpu.memory_space<vmem>>, vector<1x64xf32>
    %13 = vector.broadcast %12 : vector<1x64xf32> to vector<8x64xf32>
    %14 = arith.addf %11, %13 : vector<8x64xf32>
    %cst = arith.constant 0.000000e+00 : f32
    %15 = vector.broadcast %cst : f32 to vector<8x64xf32>
    %16 = arith.maximumf %14, %15 : vector<8x64xf32>
    %17 = arith.truncf %16 : vector<8x64xf32> to vector<8x64xbf16>
    %c0_6 = arith.constant 0 : index
    %c0_7 = arith.constant 0 : index
    %18 = vector.load %arg2[%c0_6, %c0_7] : memref<64x64xbf16, #tpu.memory_space<vmem>>, vector<64x64xbf16>
    %cst_8 = arith.constant dense<0.000000e+00> : vector<8x64xf32>
    %19 = tpu.matmul %17, %18, %cst_8 {dimension_numbers = #tpu.dot_dimension_numbers<[1], [0], [0], [1], [0, 0, 1, 1], [], []>} : vector<8x64xbf16>, vector<64x64xbf16>, vector<8x64xf32> -> vector<8x64xf32>
    %c1_9 = arith.constant 1 : index
    %c0_10 = arith.constant 0 : index
    %20 = vector.load %arg4[%c1_9, %c0_10] : memref<3x128xf32, #tpu.memory_space<vmem>>, vector<1x64xf32>
    %21 = vector.broadcast %20 : vector<1x64xf32> to vector<8x64xf32>
    %22 = arith.addf %19, %21 : vector<8x64xf32>
    %cst_11 = arith.constant 0.000000e+00 : f32
    %23 = vector.broadcast %cst_11 : f32 to vector<8x64xf32>
    %24 = arith.maximumf %22, %23 : vector<8x64xf32>
    %25 = arith.truncf %24 : vector<8x64xf32> to vector<8x64xbf16>
    %c0_12 = arith.constant 0 : index
    %c0_13 = arith.constant 0 : index
    %26 = vector.load %arg3[%c0_12, %c0_13] : memref<64x128xbf16, #tpu.memory_space<vmem>>, vector<64x128xbf16>
    %cst_14 = arith.constant dense<0.000000e+00> : vector<8x128xf32>
    %27 = tpu.matmul %25, %26, %cst_14 {dimension_numbers = #tpu.dot_dimension_numbers<[1], [0], [0], [1], [0, 0, 1, 1], [], []>} : vector<8x64xbf16>, vector<64x128xbf16>, vector<8x128xf32> -> vector<8x128xf32>
    %c2 = arith.constant 2 : index
    %c0_15 = arith.constant 0 : index
    %28 = vector.load %arg4[%c2, %c0_15] : memref<3x128xf32, #tpu.memory_space<vmem>>, vector<1x128xf32>
    %29 = vector.broadcast %28 : vector<1x128xf32> to vector<8x128xf32>
    %30 = arith.addf %27, %29 : vector<8x128xf32>
    %c0_16 = arith.constant 0 : index
    %c0_17 = arith.constant 0 : index
    %31 = vector.load %arg5[%c0_16, %c0_17] : memref<8x128xf32, #tpu.memory_space<vmem>>, vector<8x128xf32>
    tpu.vector_store %arg5[%c0_16, %c0_17], %30 {strides = array<i32>} : memref<8x128xf32, #tpu.memory_space<vmem>>, vector<8x128xf32>,
    return
  }
}

</mosaic_0001>

<llo_original>
// kernel: tpu_custom_call.1
$region0: #{tpu_custom_call.1}
  #allocation0 [shape = 'u32[]', space=smem, size = 0x4, offset = 0x4, fixed_abs, tag = 'smem constant byte address 0x4 - core index']
  #allocation1 [shape = 'u32[144,128]{1,0:T(1,128)}', space=vmem, size = 0x12000, scoped, tag = 'internal scratch']
  %s0 = inlined_call_operand.vmem [shape: f32[8,2], index: 0, kind: input, shape index: {}]
  %s1 = inlined_call_operand.vmem [shape: f32[2,64], index: 1, kind: input, shape index: {}]
  %s2 = inlined_call_operand.hbm [shape: bf16[64,64], index: 2, kind: input, shape index: {}]
  %s3 = inlined_call_operand.hbm [shape: bf16[64,128], index: 3, kind: input, shape index: {}]
  %s4 = inlined_call_operand.vmem [shape: f32[3,128], index: 4, kind: input, shape index: {}]
  %s5 = inlined_call_operand.hbm [shape: f32[8,128], index: 5, kind: output, shape index: {}]
  %s6 = sld [smem:[#allocation0]]
  $region38: #{tpu_custom_call.1} parent=0
    _
  %s8 = ssub.s32 1, %s6
  %s9 = scalar_select 0, %s8, %s6
  $region1: #{tpu_custom_call.1} parent=0
    #allocation2 [shape = 'u8[16384]{0}', space=vmem, size = 0x4000, scoped, tag = 'input window, operand 2, single buffered']
    #allocation3 [shape = 's32[1]{0}', space=sflag, size = 0x4, scoped, tag = 'scoped memory for tpu_custom_call.1']
    #allocation4 [shape = 's32[1]{0}', space=sflag, size = 0x4, scoped, tag = 'scoped memory for tpu_custom_call.1']
    #allocation5 [shape = 'u8[16384]{0}', space=vmem, size = 0x4000, scoped, tag = 'input window, operand 3, single buffered']
    #allocation6 [shape = 's32[1]{0}', space=sflag, size = 0x4, scoped, tag = 'scoped memory for tpu_custom_call.1']
    #allocation7 [shape = 'u8[4096]{0}', space=vmem, size = 0x1000, scoped, tag = 'output window, operand 0, single buffered']
    %10 = vsyncpa [#allocation3], 0
    %11 = vsyncpa [#allocation6], 0
    %12 = vsyncpa [#allocation4], 0
    // Predicated region
    $region2: #{tpu_custom_call.1} parent=1 // pred_check
      _
    $region3: #{tpu_custom_call.1} parent=1 // pred_check_branch
      %14 = sbr.rel (0) target = $region5
    $region4: #{tpu_custom_call.1} parent=1 // pred_region
      _
    $region5: #{tpu_custom_call.1} parent=1 // pred_fallthru
      _
    // Predicated region
    $region6: #{tpu_custom_call.1} parent=1 // pred_check
      _
    $region7: #{tpu_custom_call.1} parent=1 // pred_check_branch
      %16 = sbr.rel (0) target = $region9
    $region8: #{tpu_custom_call.1} parent=1 // pred_region
      _
    $region9: #{tpu_custom_call.1} parent=1 // pred_fallthru
      _
    // Predicated region
    $region10: #{tpu_custom_call.1} parent=1 // pred_check
      _
    $region11: #{tpu_custom_call.1} parent=1 // pred_check_branch
      %18 = sbr.rel (0) target = $region13
    $region12: #{tpu_custom_call.1} parent=1 // pred_region
      %s20 = ssub.s32 512, 512
      %21 = vsyncadd [#allocation3], %s20
      %s22 = sshll.u32 [#allocation2], 4
      %s23 = int_to_ptr.vmem [resolvable:$true] %s22
      %28 = dma.hbm_to_vmem [thread:$0]  %s2, 512, %s23, [#allocation3], 64, 64, 4
    $region13: #{tpu_custom_call.1} parent=1 // pred_fallthru
      _
    // Predicated region
    $region14: #{tpu_custom_call.1} parent=1 // pred_check
      _
    $region15: #{tpu_custom_call.1} parent=1 // pred_check_branch
      %30 = sbr.rel (0) target = $region17
    $region16: #{tpu_custom_call.1} parent=1 // pred_region
      %s32 = ssub.s32 512, 512
      %33 = vsyncadd [#allocation6], %s32
      %s34 = sshll.u32 [#allocation5], 4
      %s35 = int_to_ptr.vmem [resolvable:$true] %s34
      %40 = dma.hbm_to_vmem [thread:$0]  %s3, 512, %s35, [#allocation6], 64, 64, 4
    $region17: #{tpu_custom_call.1} parent=1 // pred_fallthru
      _
    // Predicated region
    $region18: #{tpu_custom_call.1} parent=1 // pred_check
      _
    $region19: #{tpu_custom_call.1} parent=1 // pred_check_branch
      %42 = sbr.rel (0) target = $region21
    $region20: #{tpu_custom_call.1} parent=1 // pred_region
      _
    $region21: #{tpu_custom_call.1} parent=1 // pred_fallthru
      _
    // Predicated region
    $region22: #{tpu_custom_call.1} parent=1 // pred_check
      _
    $region23: #{tpu_custom_call.1} parent=1 // pred_check_branch
      %44 = sbr.rel (0) target = $region25
    $region24: #{tpu_custom_call.1} parent=1 // pred_region
      %45 = dma.done [#allocation3], 512
    $region25: #{tpu_custom_call.1} parent=1 // pred_fallthru
      _
    // Predicated region
    $region26: #{tpu_custom_call.1} parent=1 // pred_check
      _
    $region27: #{tpu_custom_call.1} parent=1 // pred_check_branch
      %47 = sbr.rel (0) target = $region29
    $region28: #{tpu_custom_call.1} parent=1 // pred_region
      %48 = dma.done [#allocation6], 512
    $region29: #{tpu_custom_call.1} parent=1 // pred_fallthru
      _
    %v50 = vld [vmem:[%s0] sm:$0xff]
    %v51 = vld [vmem:[%s1] sm:$0x1]
    %53 = vset.pattern.permute.xlu0 0
    %54 = vperm.xlu0 %53, %v50
    %v55 = vpop.permute.xlu0 %54
    %v57 = vlaneseq
    %v58 = vshrl.u32 %v57, 7
    %v59 = vsub.s32 0, %v58
    %v60 = vrot.slane %v51, %v59
    %v61 = vmul.f32 %v55, %v60
    %v62 = vld [vmem:[%s1 + $0x1] sm:$0x1]
    %63 = vset.pattern.permute.xlu0 1
    %64 = vperm.xlu0 %63, %v50
    %v65 = vpop.permute.xlu0 %64
    %v67 = vlaneseq
    %v68 = vshrl.u32 %v67, 7
    %v69 = vsub.s32 0, %v68
    %v70 = vrot.slane %v62, %v69
    %v71 = vmul.f32 %v65, %v70
    %v72 = vadd.f32 %v61, %v71
    %v73 = vld [vmem:[%s4] sm:$0x1]
    %v74 = vlaneseq
    %v75 = vshrl.u32 %v74, 7
    %v76 = vsub.s32 0, %v75
    %v77 = vrot.slane %v73, %v76
    %v78 = vadd.f32 %v72, %v77
    %v79 = vmax.f32 %v78, 0.0
    %v80 = vpack.c.bf16 %v79, %v79
    %v81 = vld [vmem:[#allocation2] sm:$0xf]
    %v82 = vld [vmem:[#allocation2 + $0x4] sm:$0xf]
    %v83 = vld [vmem:[#allocation2 + $0x8] sm:$0xf]
    %v84 = vld [vmem:[#allocation2 + $0xc] sm:$0xf]
    %v85 = vld [vmem:[#allocation2 + $0x10] sm:$0xf]
    %v86 = vld [vmem:[#allocation2 + $0x14] sm:$0xf]
    %v87 = vld [vmem:[#allocation2 + $0x18] sm:$0xf]
    %v88 = vld [vmem:[#allocation2 + $0x1c] sm:$0xf]
    %v89 = vld [vmem:[%s4 + $0x1] sm:$0x1]
    %v90 = vlaneseq
    %v91 = vshrl.u32 %v90, 7
    %v92 = vsub.s32 0, %v91
    %v93 = vrot.slane %v89, %v92
    %v102 = vunpack.c.l.b16 %v81
    %v103 = vunpack.c.l.b16 %v82
    %v104 = vunpack.c.l.b16 %v83
    %v105 = vunpack.c.l.b16 %v84
    %v106 = vunpack.c.l.b16 %v85
    %v107 = vunpack.c.l.b16 %v86
    %v108 = vunpack.c.l.b16 %v87
    %v109 = vunpack.c.l.b16 %v88
    %v110 = vpack.c.b16 %v103, %v102
    %v111 = vpack.c.b16 %v105, %v104
    %v112 = vpack.c.b16 %v107, %v106
    %v113 = vpack.c.b16 %v109, %v108
    %vm118 = vcmask 523264
    %v120 = vsel %vm118, %v80, 0
    %122 = vmatprep.subr.bf16.mxu0 0
    %123 = vmatpush1.bf16.msra.mxu0 %v110
    %124 = vmatprep.subr.bf16.mxu0 0
    %125 = vmatpush1.bf16.msra.mxu0 %v111
    %126 = vmatprep.subr.bf16.mxu0 0
    %127 = vmatpush1.bf16.msra.mxu0 %v112
    %128 = vmatprep.subr.bf16.mxu0 0
    %129 = vmatpush1.bf16.msra.mxu0 %v113
    %130 = vmatprep.subr.bf16.mxu0 0
    %131 = vmatpush1.bf16.msra.mxu0 0
    %132 = vmatprep.subr.bf16.mxu0 0
    %133 = vmatpush1.bf16.msra.mxu0 0
    %134 = vmatprep.subr.bf16.mxu0 0
    %135 = vmatpush1.bf16.msra.mxu0 0
    %136 = vmatprep.subr.bf16.mxu0 0
    %137 = vmatpush1.bf16.msra.mxu0 0
    %138 = vmatprep.subr.bf16.mxu0 0
    %139 = vmatpush1.bf16.msra.mxu0 0
    %140 = vmatprep.subr.bf16.mxu0 0
    %141 = vmatpush1.bf16.msra.mxu0 0
    %142 = vmatprep.subr.bf16.mxu0 0
    %143 = vmatpush1.bf16.msra.mxu0 0
    %144 = vmatprep.subr.bf16.mxu0 0
    %145 = vmatpush1.bf16.msra.mxu0 0
    %146 = vmatprep.subr.bf16.mxu0 0
    %147 = vmatpush1.bf16.msra.mxu0 0
    %148 = vmatprep.subr.bf16.mxu0 0
    %149 = vmatpush1.bf16.msra.mxu0 0
    %150 = vmatprep.subr.bf16.mxu0 0
    %151 = vmatpush1.bf16.msra.mxu0 0
    %152 = vmatprep.subr.bf16.mxu0 0
    %153 = vmatpush1.bf16.msra.mxu0 0
    %154 = vmatprep.mubr.bf16.mxu0 0
    %155 = vmatmul.mubr.bf16.gmra.mrb[0].mxu0 %v120
    %v156 = vpop.f32.mrb[0].mxu0
    %v157 = vadd.f32 %v93, %v156
    %v158 = vpop.f32.mrb[0].mxu0
    %v159 = vpop.f32.mrb[0].mxu0
    %v160 = vpop.f32.mrb[0].mxu0
    %161 = vdwg.mxu0
    %v162 = vmax.f32 %v157, 0.0
    %v163 = vpack.c.bf16 %v162, %v162
    %v164 = vld [vmem:[#allocation5] sm:$0xf]
    %v165 = vld [vmem:[#allocation5 + $0x4] sm:$0xf]
    %v166 = vld [vmem:[#allocation5 + $0x8] sm:$0xf]
    %v167 = vld [vmem:[#allocation5 + $0xc] sm:$0xf]
    %v168 = vld [vmem:[#allocation5 + $0x10] sm:$0xf]
    %v169 = vld [vmem:[#allocation5 + $0x14] sm:$0xf]
    %v170 = vld [vmem:[#allocation5 + $0x18] sm:$0xf]
    %v171 = vld [vmem:[#allocation5 + $0x1c] sm:$0xf]
    %v172 = vld [vmem:[%s4 + $0x2] sm:$0x1]
    %v173 = vlaneseq
    %v174 = vshrl.u32 %v173, 7
    %v175 = vsub.s32 0, %v174
    %v176 = vrot.slane %v172, %v175
    %v185 = vunpack.c.l.b16 %v164
    %v186 = vunpack.c.l.b16 %v165
    %v187 = vunpack.c.l.b16 %v166
    %v188 = vunpack.c.l.b16 %v167
    %v189 = vunpack.c.l.b16 %v168
    %v190 = vunpack.c.l.b16 %v169
    %v191 = vunpack.c.l.b16 %v170
    %v192 = vunpack.c.l.b16 %v171
    %v193 = vpack.c.b16 %v186, %v185
    %v194 = vpack.c.b16 %v188, %v187
    %v195 = vpack.c.b16 %v190, %v189
    %v196 = vpack.c.b16 %v192, %v191
    %v202 = vsel %vm118, %v163, 0
    %204 = vmatprep.subr.bf16.mxu0 0
    %205 = vmatpush1.bf16.msra.mxu0 %v193
    %206 = vmatprep.subr.bf16.mxu0 0
    %207 = vmatpush1.bf16.msra.mxu0 %v194
    %208 = vmatprep.subr.bf16.mxu0 0
    %209 = vmatpush1.bf16.msra.mxu0 %v195
    %210 = vmatprep.subr.bf16.mxu0 0
    %211 = vmatpush1.bf16.msra.mxu0 %v196
    %212 = vmatprep.subr.bf16.mxu0 0
    %213 = vmatpush1.bf16.msra.mxu0 0
    %214 = vmatprep.subr.bf16.mxu0 0
    %215 = vmatpush1.bf16.msra.mxu0 0
    %216 = vmatprep.subr.bf16.mxu0 0
    %217 = vmatpush1.bf16.msra.mxu0 0
    %218 = vmatprep.subr.bf16.mxu0 0
    %219 = vmatpush1.bf16.msra.mxu0 0
    %220 = vmatprep.subr.bf16.mxu0 0
    %221 = vmatpush1.bf16.msra.mxu0 0
    %222 = vmatprep.subr.bf16.mxu0 0
    %223 = vmatpush1.bf16.msra.mxu0 0
    %224 = vmatprep.subr.bf16.mxu0 0
    %225 = vmatpush1.bf16.msra.mxu0 0
    %226 = vmatprep.subr.bf16.mxu0 0
    %227 = vmatpush1.bf16.msra.mxu0 0
    %228 = vmatprep.subr.bf16.mxu0 0
    %229 = vmatpush1.bf16.msra.mxu0 0
    %230 = vmatprep.subr.bf16.mxu0 0
    %231 = vmatpush1.bf16.msra.mxu0 0
    %232 = vmatprep.subr.bf16.mxu0 0
    %233 = vmatpush1.bf16.msra.mxu0 0
    %234 = vmatprep.subr.bf16.mxu0 0
    %235 = vmatpush1.bf16.msra.mxu0 0
    %236 = vmatprep.mubr.bf16.mxu0 0
    %237 = vmatmul.mubr.bf16.gmra.mrb[0].mxu0 %v202
    %v238 = vpop.f32.mrb[0].mxu0
    %v239 = vadd.f32 %v176, %v238
    %v240 = vpop.f32.mrb[0].mxu0
    %v241 = vpop.f32.mrb[0].mxu0
    %v242 = vpop.f32.mrb[0].mxu0
    %243 = vdwg.mxu0
    %244 = vst [vmem:[#allocation7] sm:$0xff] %v239
    // Predicated region
    $region30: #{tpu_custom_call.1} parent=1 // pred_check
      _
    $region31: #{tpu_custom_call.1} parent=1 // pred_check_branch
      %246 = sbr.rel (0) target = $region33
    $region32: #{tpu_custom_call.1} parent=1 // pred_region
      %s248 = ssub.s32 128, 128
      %249 = vsyncadd [#allocation4], %s248
      %s251 = sshll.u32 [#allocation7], 4
      %s252 = int_to_ptr.vmem [resolvable:$true] %s251
      %254 = dma.vmem_to_hbm [thread:$0]  %s252, 128, %s5, [#allocation4]
    $region33: #{tpu_custom_call.1} parent=1 // pred_fallthru
      _
    // Predicated region
    $region34: #{tpu_custom_call.1} parent=1 // pred_check
      _
    $region35: #{tpu_custom_call.1} parent=1 // pred_check_branch
      %256 = sbr.rel (0) target = $region37
    $region36: #{tpu_custom_call.1} parent=1 // pred_region
      %257 = dma.done [#allocation4], 128
    $region37: #{tpu_custom_call.1} parent=1 // pred_fallthru
      _
    %258 = vsyncpa [#allocation3], 1
    %259 = vsyncpa [#allocation6], 1
    %260 = vsyncpa [#allocation4], 1

</llo_original>
